<compile_context>
chip_gen: v6e
topology: v6e:2x2x1
jax: 0.10.0
libtpu: 0.0.40
codegen_flags: <defaults>
</compile_context>

<pallas_src>
import functools

import jax
import jax.numpy as jnp
from jax.experimental import pallas as pl
from jax.experimental.pallas import tpu as pltpu

_LANES = 128
_MXU_ROWS = 256


def _round_up(x, m):
    return ((x + m - 1) // m) * m


def _autoencoder_kernel(x_ref,
                        w1, b1, w2, b2, w3, b3,
                        w4, b4, w5, b5, w6, b6,
                        out_ref):
    """Fused forward on one batch tile: 5x (Linear+ReLU) + 1x (Linear+Sigmoid)."""
    compute_dtype = w1.dtype                      # bf16 MXU inputs
    h = x_ref[...].astype(compute_dtype)          # in-kernel cast (no HBM copy of cast x)

    def linear(h, w_ref, b_ref):
        acc = jnp.dot(h, w_ref[...], preferred_element_type=jnp.float32)
        return acc + b_ref[...]                   # bias add in f32 on the VPU

    for w_ref, b_ref in ((w1, b1), (w2, b2), (w3, b3), (w4, b4), (w5, b5)):
        # ReLU on packed bf16 values (2 elem/lane on v6e/v7x VPUs).
        h = jax.nn.relu(linear(h, w_ref, b_ref).astype(compute_dtype))
    out = jax.nn.sigmoid(linear(h, w6, b6))       # EUP exp/recip, f32
    out_ref[...] = out.astype(out_ref.dtype)


def _pad_params(params, compute_dtype):
    """Zero-pad hidden widths to 128-multiples; keep D_in / D_out exact.

    Weights are [in, out] (TRANSPOSE of torch.nn.Linear.weight); biases [1, out].
    Weights are cast to compute_dtype (bf16); biases stay f32.
    """
    n = len(params)
    padded = []
    prev_out_p = params[0][0].shape[0]            # D_in stays exact (x is not padded)
    for idx, (w, b) in enumerate(params):
        fi, fo = w.shape
        fi_p = prev_out_p
        fo_p = fo if idx == n - 1 else _round_up(fo, _LANES)   # D_out stays exact
        wp = jnp.zeros((fi_p, fo_p), compute_dtype).at[:fi, :fo].set(
            w.astype(compute_dtype))
        bp = jnp.zeros((1, fo_p), jnp.float32).at[:, :fo].set(
            b.astype(jnp.float32).reshape(1, fo))
        padded.append((wp, bp))
        prev_out_p = fo_p
    return padded


def _vmem_capacity_bytes():
    """Per-TensorCore VMEM capacity; conservative 64 MiB fallback if the query fails."""
    try:
        cap = int(getattr(pltpu.get_tpu_info(), "vmem_capacity_bytes", 0))
        if cap > 0:
            return cap
    except Exception:
        pass
    return 64 * 1024 * 1024


def _vmem_bytes_estimate(tb, padded, x_bytes, out_bytes, weight_bufs):
    """Footprint of one grid step: x/out tiles double-buffered, weights x weight_bufs."""
    d_in = padded[0][0].shape[0]
    d_out = padded[-1][0].shape[1]
    widest = max([d_in] + [w.shape[1] for w, _ in padded])
    io = 2 * tb * d_in * x_bytes + 2 * tb * d_out * out_bytes
    wts = sum(weight_bufs * (w.size * w.dtype.itemsize + b.size * 4) for w, b in padded)
    live = 4 * tb * widest * 4                    # live f32/bf16 intermediates + slack
    return io + wts + live


@functools.lru_cache(maxsize=None)
def _single_buffer_supported():
    """Probe once whether pl.Buffered(1) (single-buffered grid-invariant input) lowers."""
    def k(a_ref, b_ref, o_ref):
        o_ref[...] = a_ref[...] + b_ref[...]
    try:
        f = pl.pallas_call(
            k,
            out_shape=jax.ShapeDtypeStruct((8, 128), jnp.float32),
            grid_spec=pltpu.PrefetchScalarGridSpec(
                num_scalar_prefetch=0,
                grid=(1,),
                in_specs=[pl.BlockSpec((8, 128), lambda i: (0, 0)),
                          pl.BlockSpec((8, 128), lambda i: (0, 0),
                                       pipeline_mode=pl.Buffered(1))],
                out_specs=pl.BlockSpec((8, 128), lambda i: (0, 0)),
            ),
        )
        z = jnp.zeros((8, 128), jnp.float32)
        jax.block_until_ready(f(z, z))
        return True
    except Exception:
        return False


def autoencoder_forward(x, params, *, batch_tile=None, compute_dtype=jnp.bfloat16):
    """Fused AutoEncoder forward.

    x: [B, input_dim]; params: 6 tuples (W [in, out], b [1, out]).  NOTE: W is the
    transpose of torch.nn.Linear.weight ([out, in]) -- transpose when porting weights.
    """
    B, D_in = x.shape
    D_out = params[-1][0].shape[1]
    out_dtype = x.dtype

    padded = _pad_params(params, compute_dtype)
    x_bytes = jnp.dtype(x.dtype).itemsize
    out_bytes = jnp.dtype(out_dtype).itemsize

    single_buf = _single_buffer_supported()
    weight_bufs = 1 if single_buf else 2

    # Generation-aware VMEM budget / tile default (per-TensorCore on v7x).
    cap = _vmem_capacity_bytes()
    budget = int(cap * 0.80)           # ~102 MiB on 128 MiB chips, ~51 MiB on v7x
    limit_cap = int(cap * 0.85)
    small_vmem = cap <= 80 * 1024 * 1024
    if batch_tile is None:
        batch_tile = 256 if small_vmem else 512

    # Batch tile: sublane-aligned, MXU-height aligned when >= 256, shrunk in 256-row
    # steps against the single-buffer-aware VMEM budget.
    sub = 16 if x_bytes == 2 else 8
    tb = max(sub, min(_round_up(batch_tile, sub), _round_up(B, sub)))
    if tb >= _MXU_ROWS:
        tb = _round_up(tb, _MXU_ROWS)
    while tb > sub and _vmem_bytes_estimate(tb, padded, x_bytes, out_bytes,
                                            weight_bufs) > budget:
        if tb > _MXU_ROWS:
            tb = max(_MXU_ROWS, ((tb - 1) // _MXU_ROWS) * _MXU_ROWS)
        else:
            tb = max(sub, _round_up(tb // 2, sub))

    est = _vmem_bytes_estimate(tb, padded, x_bytes, out_bytes, weight_bufs)
    vmem_limit = min(max(int(est * 1.25) + 8 * 1024 * 1024, 32 * 1024 * 1024), limit_cap)

    # Pad batch rows only when B is not a multiple of the tile (rows only, native dtype).
    B_pad = _round_up(B, tb)
    x_in = x if B_pad == B else jnp.zeros((B_pad, D_in), x.dtype).at[:B].set(x)

    flat_args = [x_in]
    for w, b in padded:
        flat_args += [w, b]

    in_specs = [pl.BlockSpec((tb, D_in), lambda i: (i, 0))]
    for w, b in padded:
        if single_buf:
            in_specs.append(pl.BlockSpec(w.shape, lambda i: (0, 0),
                                         pipeline_mode=pl.Buffered(1)))
            in_specs.append(pl.BlockSpec(b.shape, lambda i: (0, 0),
                                         pipeline_mode=pl.Buffered(1)))
        else:
            in_specs.append(pl.BlockSpec(w.shape, lambda i: (0, 0)))
            in_specs.append(pl.BlockSpec(b.shape, lambda i: (0, 0)))

    out = pl.pallas_call(
        _autoencoder_kernel,
        out_shape=jax.ShapeDtypeStruct((B_pad, D_out), out_dtype),
        grid_spec=pltpu.PrefetchScalarGridSpec(
            num_scalar_prefetch=0,
            grid=(B_pad // tb,),
            in_specs=in_specs,
            out_specs=pl.BlockSpec((tb, D_out), lambda i: (i, 0)),
        ),
        compiler_params=pltpu.CompilerParams(
            dimension_semantics=("parallel",),
            vmem_limit_bytes=vmem_limit,
        ),
    )(*flat_args)

    return out if B_pad == B else out[:B]


def init_autoencoder_params(key, input_dim, encoding_dim, dtype=jnp.float32):
    """Deterministic synthetic init matching the nn.Module layer shapes.

    encoder: input_dim -> 3*enc -> 2*enc -> enc
    decoder: enc -> 2*input_dim -> 3*input_dim -> input_dim
    """
    dims = [
        (input_dim, encoding_dim * 3),
        (encoding_dim * 3, encoding_dim * 2),
        (encoding_dim * 2, encoding_dim),
        (encoding_dim, input_dim * 2),
        (input_dim * 2, input_dim * 3),
        (input_dim * 3, input_dim),
    ]
    params = []
    for fan_in, fan_out in dims:
        key, kw, kb = jax.random.split(key, 3)
        bound = 1.0 / (fan_in ** 0.5)
        w = jax.random.uniform(kw, (fan_in, fan_out), dtype, -bound, bound)
        b = jax.random.uniform(kb, (1, fan_out), dtype, -bound, bound)
        params.append((w, b))
    return params


def autoencoder_reference(x, params, compute_dtype=jnp.bfloat16):
    """Plain-JAX reference mirroring the kernel's bf16-matmul / f32-accumulate math."""
    h = x.astype(compute_dtype)
    n = len(params)
    for i, (w, b) in enumerate(params):
        y = jnp.dot(h, w.astype(compute_dtype), preferred_element_type=jnp.float32)
        y = y + b.astype(jnp.float32)
        h = jax.nn.relu(y.astype(compute_dtype)) if i < n - 1 else jax.nn.sigmoid(y)
    return h.astype(x.dtype)


if __name__ == "__main__":
    key = jax.random.PRNGKey(0)
    k_param, k_x = jax.random.split(key)

    batch = 8
    input_dim = 32
    encoding_dim = 8

    params = init_autoencoder_params(k_param, input_dim, encoding_dim)
    x = jax.random.uniform(k_x, (batch, input_dim), jnp.float32)

    out = jax.block_until_ready(autoencoder_forward(x, params))
    ref = autoencoder_reference(x, params)

    assert out.shape == (batch, input_dim)
    assert jnp.allclose(out, ref, atol=1e-4, rtol=1e-4), \
        float(jnp.max(jnp.abs(out - ref)))

    print("KERNEL_OK")
</pallas_src>

<mosaic_0001>
module attributes {stable_mosaic.version = 11 : i64} {
  func.func @k(%arg0: i32, %arg1: memref<8x128xf32, #tpu.memory_space<vmem>>, %arg2: memref<8x128xf32, #tpu.memory_space<vmem>>, %arg3: memref<8x128xf32, #tpu.memory_space<vmem>>) attributes {dimension_semantics = [#tpu.dimension_semantics<arbitrary>], iteration_bounds = array<i64: 1>, scalar_prefetch = 0 : i64, scratch_operands = 0 : i64, tpu.core_type = #tpu.core_type<tc>, window_params = [{pipeline_mode = #tpu.pipeline_mode<synchronous>, transform_indices = @transform_0, window_bounds = array<i64: 8, 128>}, {pipeline_mode = #tpu.pipeline_mode<synchronous>, transform_indices = @transform_1, window_bounds = array<i64: 8, 128>}, {pipeline_mode = #tpu.pipeline_mode<synchronous>, transform_indices = @transform_2, window_bounds = array<i64: 8, 128>}]} {
    %c0 = arith.constant 0 : index
    %c0_0 = arith.constant 0 : index
    %0 = vector.load %arg1[%c0, %c0_0] : memref<8x128xf32, #tpu.memory_space<vmem>>, vector<8x128xf32>
    %c0_1 = arith.constant 0 : index
    %c0_2 = arith.constant 0 : index
    %1 = vector.load %arg2[%c0_1, %c0_2] : memref<8x128xf32, #tpu.memory_space<vmem>>, vector<8x128xf32>
    %2 = arith.addf %0, %1 : vector<8x128xf32>
    %c0_3 = arith.constant 0 : index
    %c0_4 = arith.constant 0 : index
    %3 = vector.load %arg3[%c0_3, %c0_4] : memref<8x128xf32, #tpu.memory_space<vmem>>, vector<8x128xf32>
    tpu.vector_store %arg3[%c0_3, %c0_4], %2 {strides = array<i32>} : memref<8x128xf32, #tpu.memory_space<vmem>>, vector<8x128xf32>,
    return
  }
  func.func @transform_0(%arg0: i32) -> (i32, i32) {
    %c0_i32 = arith.constant 0 : i32
    %c0_i32_0 = arith.constant 0 : i32
    %c0_i32_1 = arith.constant 0 : i32
    return %c0_i32, %c0_i32_0 : i32, i32
  }
  func.func @transform_1(%arg0: i32) -> (i32, i32) {
    %c0_i32 = arith.constant 0 : i32
    %c0_i32_0 = arith.constant 0 : i32
    %c0_i32_1 = arith.constant 0 : i32
    return %c0_i32, %c0_i32_0 : i32, i32
  }
  func.func @transform_2(%arg0: i32) -> (i32, i32) {
    %c0_i32 = arith.constant 0 : i32
    %c0_i32_0 = arith.constant 0 : i32
    %c0_i32_1 = arith.constant 0 : i32
    return %c0_i32, %c0_i32_0 : i32, i32
  }
}

module attributes {stable_mosaic.version = 11 : i64} {
  func.func @_autoencoder_kernel(%arg0: i32, %arg1: memref<8x32xf32, #tpu.memory_space<vmem>>, %arg2: memref<32x128xbf16, #tpu.memory_space<vmem>>, %arg3: memref<1x128xf32, #tpu.memory_space<vmem>>, %arg4: memref<128x128xbf16, #tpu.memory_space<vmem>>, %arg5: memref<1x128xf32, #tpu.memory_space<vmem>>, %arg6: memref<128x128xbf16, #tpu.memory_space<vmem>>, %arg7: memref<1x128xf32, #tpu.memory_space<vmem>>, %arg8: memref<128x128xbf16, #tpu.memory_space<vmem>>, %arg9: memref<1x128xf32, #tpu.memory_space<vmem>>, %arg10: memref<128x128xbf16, #tpu.memory_space<vmem>>, %arg11: memref<1x128xf32, #tpu.memory_space<vmem>>, %arg12: memref<128x32xbf16, #tpu.memory_space<vmem>>, %arg13: memref<1x32xf32, #tpu.memory_space<vmem>>, %arg14: memref<8x32xf32, #tpu.memory_space<vmem>>) attributes {dimension_semantics = [#tpu.dimension_semantics<parallel>], iteration_bounds = array<i64: 1>, scalar_prefetch = 0 : i64, scratch_operands = 0 : i64, tpu.core_type = #tpu.core_type<tc>, window_params = [{transform_indices = @transform_0, window_bounds = array<i64: 8, 32>}, {pipeline_mode = #tpu.pipeline_mode<synchronous>, transform_indices = @transform_1, window_bounds = array<i64: 32, 128>}, {pipeline_mode = #tpu.pipeline_mode<synchronous>, transform_indices = @transform_2, window_bounds = array<i64: 1, 128>}, {pipeline_mode = #tpu.pipeline_mode<synchronous>, transform_indices = @transform_3, window_bounds = array<i64: 128, 128>}, {pipeline_mode = #tpu.pipeline_mode<synchronous>, transform_indices = @transform_4, window_bounds = array<i64: 1, 128>}, {pipeline_mode = #tpu.pipeline_mode<synchronous>, transform_indices = @transform_5, window_bounds = array<i64: 128, 128>}, {pipeline_mode = #tpu.pipeline_mode<synchronous>, transform_indices = @transform_6, window_bounds = array<i64: 1, 128>}, {pipeline_mode = #tpu.pipeline_mode<synchronous>, transform_indices = @transform_7, window_bounds = array<i64: 128, 128>}, {pipeline_mode = #tpu.pipeline_mode<synchronous>, transform_indices = @transform_8, window_bounds = array<i64: 1, 128>}, {pipeline_mode = #tpu.pipeline_mode<synchronous>, transform_indices = @transform_9, window_bounds = array<i64: 128, 128>}, {pipeline_mode = #tpu.pipeline_mode<synchronous>, transform_indices = @transform_10, window_bounds = array<i64: 1, 128>}, {pipeline_mode = #tpu.pipeline_mode<synchronous>, transform_indices = @transform_11, window_bounds = array<i64: 128, 32>}, {pipeline_mode = #tpu.pipeline_mode<synchronous>, transform_indices = @transform_12, window_bounds = array<i64: 1, 32>}, {transform_indices = @transform_13, window_bounds = array<i64: 8, 32>}]} {
    %c0 = arith.constant 0 : index
    %c0_0 = arith.constant 0 : index
    %0 = vector.load %arg1[%c0, %c0_0] : memref<8x32xf32, #tpu.memory_space<vmem>>, vector<8x32xf32>
    %1 = arith.truncf %0 : vector<8x32xf32> to vector<8x32xbf16>
    %c0_1 = arith.constant 0 : index
    %c0_2 = arith.constant 0 : index
    %2 = vector.load %arg2[%c0_1, %c0_2] : memref<32x128xbf16, #tpu.memory_space<vmem>>, vector<32x128xbf16>
    %cst = arith.constant dense<0.000000e+00> : vector<8x128xf32>
    %3 = tpu.matmul %1, %2, %cst {dimension_numbers = #tpu.dot_dimension_numbers<[1], [0], [0], [1], [0, 0, 1, 1], [], []>} : vector<8x32xbf16>, vector<32x128xbf16>, vector<8x128xf32> -> vector<8x128xf32>
    %c0_3 = arith.constant 0 : index
    %c0_4 = arith.constant 0 : index
    %4 = vector.load %arg3[%c0_3, %c0_4] : memref<1x128xf32, #tpu.memory_space<vmem>>, vector<1x128xf32>
    %5 = vector.broadcast %4 : vector<1x128xf32> to vector<8x128xf32>
    %6 = arith.addf %3, %5 : vector<8x128xf32>
    %7 = arith.truncf %6 : vector<8x128xf32> to vector<8x128xbf16>
    %cst_5 = arith.constant 0.000000e+00 : bf16
    %8 = vector.broadcast %cst_5 : bf16 to vector<8x128xbf16>
    %9 = arith.maximumf %7, %8 : vector<8x128xbf16>
    %c0_6 = arith.constant 0 : index
    %c0_7 = arith.constant 0 : index
    %10 = vector.load %arg4[%c0_6, %c0_7] : memref<128x128xbf16, #tpu.memory_space<vmem>>, vector<128x128xbf16>
    %cst_8 = arith.constant dense<0.000000e+00> : vector<8x128xf32>
    %11 = tpu.matmul %9, %10, %cst_8 {dimension_numbers = #tpu.dot_dimension_numbers<[1], [0], [0], [1], [0, 0, 1, 1], [], []>} : vector<8x128xbf16>, vector<128x128xbf16>, vector<8x128xf32> -> vector<8x128xf32>
    %c0_9 = arith.constant 0 : index
    %c0_10 = arith.constant 0 : index
    %12 = vector.load %arg5[%c0_9, %c0_10] : memref<1x128xf32, #tpu.memory_space<vmem>>, vector<1x128xf32>
    %13 = vector.broadcast %12 : vector<1x128xf32> to vector<8x128xf32>
    %14 = arith.addf %11, %13 : vector<8x128xf32>
    %15 = arith.truncf %14 : vector<8x128xf32> to vector<8x128xbf16>
    %cst_11 = arith.constant 0.000000e+00 : bf16
    %16 = vector.broadcast %cst_11 : bf16 to vector<8x128xbf16>
    %17 = arith.maximumf %15, %16 : vector<8x128xbf16>
    %c0_12 = arith.constant 0 : index
    %c0_13 = arith.constant 0 : index
    %18 = vector.load %arg6[%c0_12, %c0_13] : memref<128x128xbf16, #tpu.memory_space<vmem>>, vector<128x128xbf16>
    %cst_14 = arith.constant dense<0.000000e+00> : vector<8x128xf32>
    %19 = tpu.matmul %17, %18, %cst_14 {dimension_numbers = #tpu.dot_dimension_numbers<[1], [0], [0], [1], [0, 0, 1, 1], [], []>} : vector<8x128xbf16>, vector<128x128xbf16>, vector<8x128xf32> -> vector<8x128xf32>
    %c0_15 = arith.constant 0 : index
    %c0_16 = arith.constant 0 : index
    %20 = vector.load %arg7[%c0_15, %c0_16] : memref<1x128xf32, #tpu.memory_space<vmem>>, vector<1x128xf32>
    %21 = vector.broadcast %20 : vector<1x128xf32> to vector<8x128xf32>
    %22 = arith.addf %19, %21 : vector<8x128xf32>
    %23 = arith.truncf %22 : vector<8x128xf32> to vector<8x128xbf16>
    %cst_17 = arith.constant 0.000000e+00 : bf16
    %24 = vector.broadcast %cst_17 : bf16 to vector<8x128xbf16>
    %25 = arith.maximumf %23, %24 : vector<8x128xbf16>
    %c0_18 = arith.constant 0 : index
    %c0_19 = arith.constant 0 : index
    %26 = vector.load %arg8[%c0_18, %c0_19] : memref<128x128xbf16, #tpu.memory_space<vmem>>, vector<128x128xbf16>
    %cst_20 = arith.constant dense<0.000000e+00> : vector<8x128xf32>
    %27 = tpu.matmul %25, %26, %cst_20 {dimension_numbers = #tpu.dot_dimension_numbers<[1], [0], [0], [1], [0, 0, 1, 1], [], []>} : vector<8x128xbf16>, vector<128x128xbf16>, vector<8x128xf32> -> vector<8x128xf32>
    %c0_21 = arith.constant 0 : index
    %c0_22 = arith.constant 0 : index
    %28 = vector.load %arg9[%c0_21, %c0_22] : memref<1x128xf32, #tpu.memory_space<vmem>>, vector<1x128xf32>
    %29 = vector.broadcast %28 : vector<1x128xf32> to vector<8x128xf32>
    %30 = arith.addf %27, %29 : vector<8x128xf32>
    %31 = arith.truncf %30 : vector<8x128xf32> to vector<8x128xbf16>
    %cst_23 = arith.constant 0.000000e+00 : bf16
    %32 = vector.broadcast %cst_23 : bf16 to vector<8x128xbf16>
    %33 = arith.maximumf %31, %32 : vector<8x128xbf16>
    %c0_24 = arith.constant 0 : index
    %c0_25 = arith.constant 0 : index
    %34 = vector.load %arg10[%c0_24, %c0_25] : memref<128x128xbf16, #tpu.memory_space<vmem>>, vector<128x128xbf16>
    %cst_26 = arith.constant dense<0.000000e+00> : vector<8x128xf32>
    %35 = tpu.matmul %33, %34, %cst_26 {dimension_numbers = #tpu.dot_dimension_numbers<[1], [0], [0], [1], [0, 0, 1, 1], [], []>} : vector<8x128xbf16>, vector<128x128xbf16>, vector<8x128xf32> -> vector<8x128xf32>
    %c0_27 = arith.constant 0 : index
    %c0_28 = arith.constant 0 : index
    %36 = vector.load %arg11[%c0_27, %c0_28] : memref<1x128xf32, #tpu.memory_space<vmem>>, vector<1x128xf32>
    %37 = vector.broadcast %36 : vector<1x128xf32> to vector<8x128xf32>
    %38 = arith.addf %35, %37 : vector<8x128xf32>
    %39 = arith.truncf %38 : vector<8x128xf32> to vector<8x128xbf16>
    %cst_29 = arith.constant 0.000000e+00 : bf16
    %40 = vector.broadcast %cst_29 : bf16 to vector<8x128xbf16>
    %41 = arith.maximumf %39, %40 : vector<8x128xbf16>
    %c0_30 = arith.constant 0 : index
    %c0_31 = arith.constant 0 : index
    %42 = vector.load %arg12[%c0_30, %c0_31] : memref<128x32xbf16, #tpu.memory_space<vmem>>, vector<128x32xbf16>
    %cst_32 = arith.constant dense<0.000000e+00> : vector<8x32xf32>
    %43 = tpu.matmul %41, %42, %cst_32 {dimension_numbers = #tpu.dot_dimension_numbers<[1], [0], [0], [1], [0, 0, 1, 1], [], []>} : vector<8x128xbf16>, vector<128x32xbf16>, vector<8x32xf32> -> vector<8x32xf32>
    %c0_33 = arith.constant 0 : index
    %c0_34 = arith.constant 0 : index
    %44 = vector.load %arg13[%c0_33, %c0_34] : memref<1x32xf32, #tpu.memory_space<vmem>>, vector<1x32xf32>
    %45 = vector.broadcast %44 : vector<1x32xf32> to vector<8x32xf32>
    %46 = arith.addf %43, %45 : vector<8x32xf32>
    %47 = arith.negf %46 : vector<8x32xf32>
    %48 = math.exp %47 : vector<8x32xf32>
    %cst_35 = arith.constant 1.000000e+00 : f32
    %49 = vector.broadcast %cst_35 : f32 to vector<8x32xf32>
    %50 = arith.addf %49, %48 : vector<8x32xf32>
    %51 = arith.divf %49, %50 : vector<8x32xf32>
    %c0_36 = arith.constant 0 : index
    %c0_37 = arith.constant 0 : index
    %52 = vector.load %arg14[%c0_36, %c0_37] : memref<8x32xf32, #tpu.memory_space<vmem>>, vector<8x32xf32>
    tpu.vector_store %arg14[%c0_36, %c0_37], %51 {strides = array<i32>} : memref<8x32xf32, #tpu.memory_space<vmem>>, vector<8x32xf32>,
    return
  }
  func.func @transform_0(%arg0: i32) -> (i32, i32) {
    %c0_i32 = arith.constant 0 : i32
    %c0_i32_0 = arith.constant 0 : i32
    return %arg0, %c0_i32 : i32, i32
  }
  func.func @transform_1(%arg0: i32) -> (i32, i32) {
    %c0_i32 = arith.constant 0 : i32
    %c0_i32_0 = arith.constant 0 : i32
    %c0_i32_1 = arith.constant 0 : i32
    return %c0_i32, %c0_i32_0 : i32, i32
  }
  func.func @transform_2(%arg0: i32) -> (i32, i32) {
    %c0_i32 = arith.constant 0 : i32
    %c0_i32_0 = arith.constant 0 : i32
    %c0_i32_1 = arith.constant 0 : i32
    return %c0_i32, %c0_i32_0 : i32, i32
  }
  func.func @transform_3(%arg0: i32) -> (i32, i32) {
    %c0_i32 = arith.constant 0 : i32
    %c0_i32_0 = arith.constant 0 : i32
    %c0_i32_1 = arith.constant 0 : i32
    return %c0_i32, %c0_i32_0 : i32, i32
  }
  func.func @transform_4(%arg0: i32) -> (i32, i32) {
    %c0_i32 = arith.constant 0 : i32
    %c0_i32_0 = arith.constant 0 : i32
    %c0_i32_1 = arith.constant 0 : i32
    return %c0_i32, %c0_i32_0 : i32, i32
  }
  func.func @transform_5(%arg0: i32) -> (i32, i32) {
    %c0_i32 = arith.constant 0 : i32
    %c0_i32_0 = arith.constant 0 : i32
    %c0_i32_1 = arith.constant 0 : i32
    return %c0_i32, %c0_i32_0 : i32, i32
  }
  func.func @transform_6(%arg0: i32) -> (i32, i32) {
    %c0_i32 = arith.constant 0 : i32
    %c0_i32_0 = arith.constant 0 : i32
    %c0_i32_1 = arith.constant 0 : i32
    return %c0_i32, %c0_i32_0 : i32, i32
  }
  func.func @transform_7(%arg0: i32) -> (i32, i32) {
    %c0_i32 = arith.constant 0 : i32
    %c0_i32_0 = arith.constant 0 : i32
    %c0_i32_1 = arith.constant 0 : i32
    return %c0_i32, %c0_i32_0 : i32, i32
  }
  func.func @transform_8(%arg0: i32) -> (i32, i32) {
    %c0_i32 = arith.constant 0 : i32
    %c0_i32_0 = arith.constant 0 : i32
    %c0_i32_1 = arith.constant 0 : i32
    return %c0_i32, %c0_i32_0 : i32, i32
  }
  func.func @transform_9(%arg0: i32) -> (i32, i32) {
    %c0_i32 = arith.constant 0 : i32
    %c0_i32_0 = arith.constant 0 : i32
    %c0_i32_1 = arith.constant 0 : i32
    return %c0_i32, %c0_i32_0 : i32, i32
  }
  func.func @transform_10(%arg0: i32) -> (i32, i32) {
    %c0_i32 = arith.constant 0 : i32
    %c0_i32_0 = arith.constant 0 : i32
    %c0_i32_1 = arith.constant 0 : i32
    return %c0_i32, %c0_i32_0 : i32, i32
  }
  func.func @transform_11(%arg0: i32) -> (i32, i32) {
    %c0_i32 = arith.constant 0 : i32
    %c0_i32_0 = arith.constant 0 : i32
    %c0_i32_1 = arith.constant 0 : i32
    return %c0_i32, %c0_i32_0 : i32, i32
  }
  func.func @transform_12(%arg0: i32) -> (i32, i32) {
    %c0_i32 = arith.constant 0 : i32
    %c0_i32_0 = arith.constant 0 : i32
    %c0_i32_1 = arith.constant 0 : i32
    return %c0_i32, %c0_i32_0 : i32, i32
  }
  func.func @transform_13(%arg0: i32) -> (i32, i32) {
    %c0_i32 = arith.constant 0 : i32
    %c0_i32_0 = arith.constant 0 : i32
    return %arg0, %c0_i32 : i32, i32
  }
}

</mosaic_0001>

<llo_original>
// kernel: tpu_custom_call.1
$region0: #{tpu_custom_call.1}
  #allocation0 [shape = 'u32[]', space=smem, size = 0x4, offset = 0x4, fixed_abs, tag = 'smem constant byte address 0x4 - core index']
  #allocation1 [shape = 'u32[144,128]{1,0:T(1,128)}', space=vmem, size = 0x12000, scoped, tag = 'internal scratch']
  %s0 = inlined_call_operand.hbm [shape: f32[8,128], index: 0, kind: input, shape index: {}]
  %s1 = inlined_call_operand.hbm [shape: f32[8,128], index: 1, kind: input, shape index: {}]
  %s2 = inlined_call_operand.hbm [shape: f32[8,128], index: 2, kind: output, shape index: {}]
  %s3 = sld [smem:[#allocation0]]
  $region26: #{tpu_custom_call.1} parent=0
    _
  %s5 = ssub.s32 1, %s3
  %s6 = scalar_select 0, %s5, %s3
  $region1: #{tpu_custom_call.1} parent=0
    #allocation2 [shape = 'u8[4096]{0}', space=vmem, size = 0x1000, scoped, tag = 'input window, operand 0, single buffered']
    #allocation3 [shape = 's32[1]{0}', space=sflag, size = 0x4, scoped, tag = 'scoped memory for tpu_custom_call.1']
    #allocation4 [shape = 's32[1]{0}', space=sflag, size = 0x4, scoped, tag = 'scoped memory for tpu_custom_call.1']
    #allocation5 [shape = 'u8[4096]{0}', space=vmem, size = 0x1000, scoped, tag = 'input window, operand 1, single buffered']
    #allocation6 [shape = 's32[1]{0}', space=sflag, size = 0x4, scoped, tag = 'scoped memory for tpu_custom_call.1']
    #allocation7 [shape = 'u8[4096]{0}', space=vmem, size = 0x1000, scoped, tag = 'output window, operand 0, single buffered']
    %7 = vsyncpa [#allocation3], 0
    %8 = vsyncpa [#allocation6], 0
    %9 = vsyncpa [#allocation4], 0
    // Predicated region
    $region2: #{tpu_custom_call.1} parent=1 // pred_check
      _
    $region3: #{tpu_custom_call.1} parent=1 // pred_check_branch
      %11 = sbr.rel (0) target = $region5
    $region4: #{tpu_custom_call.1} parent=1 // pred_region
      %s13 = ssub.s32 128, 128
      %14 = vsyncadd [#allocation3], %s13
      %s16 = sshll.u32 [#allocation2], 4
      %s17 = int_to_ptr.vmem [resolvable:$true] %s16
      %19 = dma.hbm_to_vmem [thread:$0]  %s0, 128, %s17, [#allocation3]
    $region5: #{tpu_custom_call.1} parent=1 // pred_fallthru
      _
    // Predicated region
    $region6: #{tpu_custom_call.1} parent=1 // pred_check
      _
    $region7: #{tpu_custom_call.1} parent=1 // pred_check_branch
      %21 = sbr.rel (0) target = $region9
    $region8: #{tpu_custom_call.1} parent=1 // pred_region
      %s23 = ssub.s32 128, 128
      %24 = vsyncadd [#allocation6], %s23
      %s26 = sshll.u32 [#allocation5], 4
      %s27 = int_to_ptr.vmem [resolvable:$true] %s26
      %29 = dma.hbm_to_vmem [thread:$0]  %s1, 128, %s27, [#allocation6]
    $region9: #{tpu_custom_call.1} parent=1 // pred_fallthru
      _
    // Predicated region
    $region10: #{tpu_custom_call.1} parent=1 // pred_check
      _
    $region11: #{tpu_custom_call.1} parent=1 // pred_check_branch
      %31 = sbr.rel (0) target = $region13
    $region12: #{tpu_custom_call.1} parent=1 // pred_region
      %32 = dma.done [#allocation3], 128
    $region13: #{tpu_custom_call.1} parent=1 // pred_fallthru
      _
    // Predicated region
    $region14: #{tpu_custom_call.1} parent=1 // pred_check
      _
    $region15: #{tpu_custom_call.1} parent=1 // pred_check_branch
      %34 = sbr.rel (0) target = $region17
    $region16: #{tpu_custom_call.1} parent=1 // pred_region
      %35 = dma.done [#allocation6], 128
    $region17: #{tpu_custom_call.1} parent=1 // pred_fallthru
      _
    %v36 = vld [vmem:[#allocation2] sm:$0xff]
    %v37 = vld [vmem:[#allocation5] sm:$0xff]
    %v38 = vadd.f32 %v36, %v37
    %39 = vst [vmem:[#allocation7] sm:$0xff] %v38
    // Predicated region
    $region18: #{tpu_custom_call.1} parent=1 // pred_check
      _
    $region19: #{tpu_custom_call.1} parent=1 // pred_check_branch
      %41 = sbr.rel (0) target = $region21
    $region20: #{tpu_custom_call.1} parent=1 // pred_region
      %s43 = ssub.s32 128, 128
      %44 = vsyncadd [#allocation4], %s43
      %s46 = sshll.u32 [#allocation7], 4
      %s47 = int_to_ptr.vmem [resolvable:$true] %s46
      %49 = dma.vmem_to_hbm [thread:$0]  %s47, 128, %s2, [#allocation4]
    $region21: #{tpu_custom_call.1} parent=1 // pred_fallthru
      _
    // Predicated region
    $region22: #{tpu_custom_call.1} parent=1 // pred_check
      _
    $region23: #{tpu_custom_call.1} parent=1 // pred_check_branch
      %51 = sbr.rel (0) target = $region25
    $region24: #{tpu_custom_call.1} parent=1 // pred_region
      %52 = dma.done [#allocation4], 128
    $region25: #{tpu_custom_call.1} parent=1 // pred_fallthru
      _
    %53 = vsyncpa [#allocation3], 1
    %54 = vsyncpa [#allocation6], 1
    %55 = vsyncpa [#allocation4], 1

// kernel: tpu_custom_call.1
$region0: #{tpu_custom_call.1}
  #allocation0 [shape = 'u32[]', space=smem, size = 0x4, offset = 0x4, fixed_abs, tag = 'smem constant byte address 0x4 - core index']
  #allocation1 [shape = 'u32[144,128]{1,0:T(1,128)}', space=vmem, size = 0x12000, scoped, tag = 'internal scratch']
  %s0 = inlined_call_operand.hbm [shape: f32[8,32], index: 0, kind: input, shape index: {}]
  %s1 = inlined_call_operand.vmem [shape: bf16[32,128], index: 1, kind: input, shape index: {}]
  %s2 = inlined_call_operand.vmem [shape: f32[1,128], index: 2, kind: input, shape index: {}]
  %s3 = inlined_call_operand.vmem [shape: bf16[128,128], index: 3, kind: input, shape index: {}]
  %s4 = inlined_call_operand.vmem [shape: f32[1,128], index: 4, kind: input, shape index: {}]
  %s5 = inlined_call_operand.hbm [shape: bf16[128,128], index: 5, kind: input, shape index: {}]
  %s6 = inlined_call_operand.vmem [shape: f32[1,128], index: 6, kind: input, shape index: {}]
  %s7 = inlined_call_operand.hbm [shape: bf16[128,128], index: 7, kind: input, shape index: {}]
  %s8 = inlined_call_operand.vmem [shape: f32[1,128], index: 8, kind: input, shape index: {}]
  %s9 = inlined_call_operand.hbm [shape: bf16[128,128], index: 9, kind: input, shape index: {}]
  %s10 = inlined_call_operand.hbm [shape: f32[1,128], index: 10, kind: input, shape index: {}]
  %s11 = inlined_call_operand.vmem [shape: bf16[128,32], index: 11, kind: input, shape index: {}]
  %s12 = inlined_call_operand.vmem [shape: f32[1,32], index: 12, kind: input, shape index: {}]
  %s13 = inlined_call_operand.hbm [shape: f32[8,32], index: 13, kind: output, shape index: {}]
  %s14 = sld [smem:[#allocation0]]
  $region82: #{tpu_custom_call.1} parent=0
    _
  %s16 = ssub.s32 1, %s14
  %s17 = scalar_select 0, %s16, %s14
  $region1: #{tpu_custom_call.1} parent=0
    #allocation2 [shape = 'u8[4096]{0}', space=vmem, size = 0x1000, scoped, tag = 'input window, operand 0, single buffered']
    #allocation3 [shape = 's32[1]{0}', space=sflag, size = 0x4, scoped, tag = 'scoped memory for tpu_custom_call.1']
    #allocation4 [shape = 's32[1]{0}', space=sflag, size = 0x4, scoped, tag = 'scoped memory for tpu_custom_call.1']
    #allocation5 [shape = 'u8[32768]{0}', space=vmem, size = 0x8000, scoped, tag = 'input window, operand 5, single buffered']
    #allocation6 [shape = 's32[1]{0}', space=sflag, size = 0x4, scoped, tag = 'scoped memory for tpu_custom_call.1']
    #allocation7 [shape = 'u8[32768]{0}', space=vmem, size = 0x8000, scoped, tag = 'input window, operand 7, single buffered']
    #allocation8 [shape = 'u8[32768]{0}', space=vmem, size = 0x8000, scoped, tag = 'input window, operand 9, single buffered']
    #allocation9 [shape = 's32[1]{0}', space=sflag, size = 0x4, scoped, tag = 'scoped memory for tpu_custom_call.1']
    #allocation10 [shape = 'u8[512]{0}', space=vmem, size = 0x400, scoped, tag = 'input window, operand 10, single buffered']
    #allocation11 [shape = 'u8[4096]{0}', space=vmem, size = 0x1000, scoped, tag = 'output window, operand 0, single buffered']
    %18 = vsyncpa [#allocation3], 0
    %19 = vsyncpa [#allocation6], 0
    %20 = vsyncpa [#allocation9], 0
    %21 = vsyncpa [#allocation4], 0
    // Predicated region
    $region2: #{tpu_custom_call.1} parent=1 // pred_check
      _
    $region3: #{tpu_custom_call.1} parent=1 // pred_check_branch
      %23 = sbr.rel (0) target = $region5
    $region4: #{tpu_custom_call.1} parent=1 // pred_region
      %s25 = ssub.s32 128, 128
      %26 = vsyncadd [#allocation3], %s25
      %s28 = sshll.u32 [#allocation2], 4
      %s29 = int_to_ptr.vmem [resolvable:$true] %s28
      %31 = dma.hbm_to_vmem [thread:$0]  %s0, 128, %s29, [#allocation3]
    $region5: #{tpu_custom_call.1} parent=1 // pred_fallthru
      _
    // Predicated region
    $region6: #{tpu_custom_call.1} parent=1 // pred_check
      _
    $region7: #{tpu_custom_call.1} parent=1 // pred_check_branch
      %33 = sbr.rel (0) target = $region9
    $region8: #{tpu_custom_call.1} parent=1 // pred_region
      _
    $region9: #{tpu_custom_call.1} parent=1 // pred_fallthru
      _
    // Predicated region
    $region10: #{tpu_custom_call.1} parent=1 // pred_check
      _
    $region11: #{tpu_custom_call.1} parent=1 // pred_check_branch
      %35 = sbr.rel (0) target = $region13
    $region12: #{tpu_custom_call.1} parent=1 // pred_region
      _
    $region13: #{tpu_custom_call.1} parent=1 // pred_fallthru
      _
    // Predicated region
    $region14: #{tpu_custom_call.1} parent=1 // pred_check
      _
    $region15: #{tpu_custom_call.1} parent=1 // pred_check_branch
      %37 = sbr.rel (0) target = $region17
    $region16: #{tpu_custom_call.1} parent=1 // pred_region
      _
    $region17: #{tpu_custom_call.1} parent=1 // pred_fallthru
      _
    // Predicated region
    $region18: #{tpu_custom_call.1} parent=1 // pred_check
      _
    $region19: #{tpu_custom_call.1} parent=1 // pred_check_branch
      %39 = sbr.rel (0) target = $region21
    $region20: #{tpu_custom_call.1} parent=1 // pred_region
      _
    $region21: #{tpu_custom_call.1} parent=1 // pred_fallthru
      _
    // Predicated region
    $region22: #{tpu_custom_call.1} parent=1 // pred_check
      _
    $region23: #{tpu_custom_call.1} parent=1 // pred_check_branch
      %41 = sbr.rel (0) target = $region25
    $region24: #{tpu_custom_call.1} parent=1 // pred_region
      %s43 = ssub.s32 1024, 1024
      %44 = vsyncadd [#allocation6], %s43
      %s45 = sshll.u32 [#allocation5], 4
      %s46 = int_to_ptr.vmem [resolvable:$true] %s45
      %51 = dma.hbm_to_vmem [thread:$0]  %s5, 1024, %s46, [#allocation6], 64, 64, 4
    $region25: #{tpu_custom_call.1} parent=1 // pred_fallthru
      _
    // Predicated region
    $region26: #{tpu_custom_call.1} parent=1 // pred_check
      _
    $region27: #{tpu_custom_call.1} parent=1 // pred_check_branch
      %53 = sbr.rel (0) target = $region29
    $region28: #{tpu_custom_call.1} parent=1 // pred_region
      _
    $region29: #{tpu_custom_call.1} parent=1 // pred_fallthru
      _
    // Predicated region
    $region30: #{tpu_custom_call.1} parent=1 // pred_check
      _
    $region31: #{tpu_custom_call.1} parent=1 // pred_check_branch
      %55 = sbr.rel (0) target = $region33
    $region32: #{tpu_custom_call.1} parent=1 // pred_region
      %s57 = ssub.s32 1024, 1024
      %58 = vsyncadd [#allocation6], %s57
      %s59 = sshll.u32 [#allocation7], 4
      %s60 = int_to_ptr.vmem [resolvable:$true] %s59
      %65 = dma.hbm_to_vmem [thread:$0]  %s7, 1024, %s60, [#allocation6], 64, 64, 4
    $region33: #{tpu_custom_call.1} parent=1 // pred_fallthru
      _
    // Predicated region
    $region34: #{tpu_custom_call.1} parent=1 // pred_check
      _
    $region35: #{tpu_custom_call.1} parent=1 // pred_check_branch
      %67 = sbr.rel (0) target = $region37
    $region36: #{tpu_custom_call.1} parent=1 // pred_region
      _
    $region37: #{tpu_custom_call.1} parent=1 // pred_fallthru
      _
    // Predicated region
    $region38: #{tpu_custom_call.1} parent=1 // pred_check
      _
    $region39: #{tpu_custom_call.1} parent=1 // pred_check_branch
      %69 = sbr.rel (0) target = $region41
    $region40: #{tpu_custom_call.1} parent=1 // pred_region
      %s71 = ssub.s32 1024, 1024
      %72 = vsyncadd [#allocation9], %s71
      %s73 = sshll.u32 [#allocation8], 4
      %s74 = int_to_ptr.vmem [resolvable:$true] %s73
      %79 = dma.hbm_to_vmem [thread:$0]  %s9, 1024, %s74, [#allocation9], 64, 64, 4
    $region41: #{tpu_custom_call.1} parent=1 // pred_fallthru
      _
    // Predicated region
    $region42: #{tpu_custom_call.1} parent=1 // pred_check
      _
    $region43: #{tpu_custom_call.1} parent=1 // pred_check_branch
      %81 = sbr.rel (0) target = $region45
    $region44: #{tpu_custom_call.1} parent=1 // pred_region
      %s83 = ssub.s32 16, 16
      %84 = vsyncadd [#allocation9], %s83
      %s86 = sshll.u32 [#allocation10], 4
      %s87 = int_to_ptr.vmem [resolvable:$true] %s86
      %89 = dma.hbm_to_vmem [thread:$0]  %s10, 16, %s87, [#allocation9]
    $region45: #{tpu_custom_call.1} parent=1 // pred_fallthru
      _
    // Predicated region
    $region46: #{tpu_custom_call.1} parent=1 // pred_check
      _
    $region47: #{tpu_custom_call.1} parent=1 // pred_check_branch
      %91 = sbr.rel (0) target = $region49
    $region48: #{tpu_custom_call.1} parent=1 // pred_region
      _
    $region49: #{tpu_custom_call.1} parent=1 // pred_fallthru
      _
    // Predicated region
    $region50: #{tpu_custom_call.1} parent=1 // pred_check
      _
    $region51: #{tpu_custom_call.1} parent=1 // pred_check_branch
      %93 = sbr.rel (0) target = $region53
    $region52: #{tpu_custom_call.1} parent=1 // pred_region
      _
    $region53: #{tpu_custom_call.1} parent=1 // pred_fallthru
      _
    // Predicated region
    $region54: #{tpu_custom_call.1} parent=1 // pred_check
      _
    $region55: #{tpu_custom_call.1} parent=1 // pred_check_branch
      %95 = sbr.rel (0) target = $region57
    $region56: #{tpu_custom_call.1} parent=1 // pred_region
      %96 = dma.done [#allocation3], 128
    $region57: #{tpu_custom_call.1} parent=1 // pred_fallthru
      _
    // Predicated region
    $region58: #{tpu_custom_call.1} parent=1 // pred_check
      _
    $region59: #{tpu_custom_call.1} parent=1 // pred_check_branch
      %98 = sbr.rel (0) target = $region61
    $region60: #{tpu_custom_call.1} parent=1 // pred_region
      %99 = dma.done [#allocation6], 1024
    $region61: #{tpu_custom_call.1} parent=1 // pred_fallthru
      _
    // Predicated region
    $region62: #{tpu_custom_call.1} parent=1 // pred_check
      _
    $region63: #{tpu_custom_call.1} parent=1 // pred_check_branch
      %101 = sbr.rel (0) target = $region65
    $region64: #{tpu_custom_call.1} parent=1 // pred_region
      %102 = dma.done [#allocation6], 1024
    $region65: #{tpu_custom_call.1} parent=1 // pred_fallthru
      _
    // Predicated region
    $region66: #{tpu_custom_call.1} parent=1 // pred_check
      _
    $region67: #{tpu_custom_call.1} parent=1 // pred_check_branch
      %104 = sbr.rel (0) target = $region69
    $region68: #{tpu_custom_call.1} parent=1 // pred_region
      %105 = dma.done [#allocation9], 1024
    $region69: #{tpu_custom_call.1} parent=1 // pred_fallthru
      _
    // Predicated region
    $region70: #{tpu_custom_call.1} parent=1 // pred_check
      _
    $region71: #{tpu_custom_call.1} parent=1 // pred_check_branch
      %107 = sbr.rel (0) target = $region73
    $region72: #{tpu_custom_call.1} parent=1 // pred_region
      %108 = dma.done [#allocation9], 16
    $region73: #{tpu_custom_call.1} parent=1 // pred_fallthru
      _
    %v110 = vld [vmem:[#allocation2] sm:$0xff]
    %v111 = vpack.c.bf16 %v110, %v110
    %v112 = vld [vmem:[%s1] sm:$0xf]
    %v113 = vld [vmem:[%s1 + $0x4] sm:$0xf]
    %v114 = vld [vmem:[%s1 + $0x8] sm:$0xf]
    %v115 = vld [vmem:[%s1 + $0xc] sm:$0xf]
    %v116 = vld [vmem:[%s2] sm:$0x1]
    %v118 = vlaneseq
    %v119 = vshrl.u32 %v118, 7
    %v120 = vsub.s32 0, %v119
    %v121 = vrot.slane %v116, %v120
    %v127 = vunpack.c.l.b16 %v112
    %v128 = vunpack.c.l.b16 %v113
    %v129 = vunpack.c.l.b16 %v114
    %v130 = vunpack.c.l.b16 %v115
    %v131 = vpack.c.b16 %v128, %v127
    %v132 = vpack.c.b16 %v130, %v129
    %vm135 = vcmask 261120
    %v137 = vsel %vm135, %v111, 0
    %139 = vmatprep.subr.bf16.mxu0 0
    %140 = vmatpush1.bf16.msra.mxu0 0
    %141 = vmatprep.subr.bf16.mxu0 0
    %142 = vmatpush1.bf16.msra.mxu0 0
    %143 = vmatprep.subr.bf16.mxu0 0
    %144 = vmatpush1.bf16.msra.mxu0 0
    %145 = vmatprep.subr.bf16.mxu0 0
    %146 = vmatpush1.bf16.msra.mxu0 0
    %147 = vmatprep.subr.bf16.mxu0 0
    %148 = vmatpush1.bf16.msra.mxu0 0
    %149 = vmatprep.subr.bf16.mxu0 0
    %150 = vmatpush1.bf16.msra.mxu0 0
    %151 = vmatprep.subr.bf16.mxu0 0
    %152 = vmatpush1.bf16.msra.mxu0 %v132
    %153 = vmatprep.subr.bf16.mxu0 0
    %154 = vmatpush1.bf16.msra.mxu0 %v131
    %155 = vmatprep.subr.bf16.mxu0 0
    %156 = vmatpush2.bf16.msra.mxu0 0
    %157 = vmatprep.subr.bf16.mxu0 0
    %158 = vmatpush2.bf16.msra.mxu0 0
    %159 = vmatprep.subr.bf16.mxu0 0
    %160 = vmatpush2.bf16.msra.mxu0 0
    %161 = vmatprep.subr.bf16.mxu0 0
    %162 = vmatpush2.bf16.msra.mxu0 0
    %163 = vmatprep.subr.bf16.mxu0 0
    %164 = vmatpush2.bf16.msra.mxu0 0
    %165 = vmatprep.subr.bf16.mxu0 0
    %166 = vmatpush2.bf16.msra.mxu0 0
    %167 = vmatprep.subr.bf16.mxu0 0
    %168 = vmatpush2.bf16.msra.mxu0 0
    %169 = vmatprep.subr.bf16.mxu0 0
    %170 = vmatpush2.bf16.msra.mxu0 0
    %171 = vmatprep.mubr.bf16.mxu0 0
    %172 = vmatmul.mubr.bf16.gmra.mxu0 %v137
    %v173 = vpop.f32.mrf.mxu0
    %v174 = vadd.f32 %v121, %v173
    %v175 = vpop.f32.mrf.mxu0
    %v176 = vpop.f32.mrf.mxu0
    %v177 = vpop.f32.mrf.mxu0
    %178 = vdwg.mxu0
    %v179 = vpack.c.bf16 %v174, %v174
    %v180 = vmax.bf16 %v179, 0
    %v181 = vld [vmem:[%s3] sm:$0xf]
    %v182 = vld [vmem:[%s3 + $0x4] sm:$0xf]
    %v183 = vld [vmem:[%s3 + $0x8] sm:$0xf]
    %v184 = vld [vmem:[%s3 + $0xc] sm:$0xf]
    %v185 = vld [vmem:[%s3 + $0x10] sm:$0xf]
    %v186 = vld [vmem:[%s3 + $0x14] sm:$0xf]
    %v187 = vld [vmem:[%s3 + $0x18] sm:$0xf]
    %v188 = vld [vmem:[%s3 + $0x1c] sm:$0xf]
    %v189 = vld [vmem:[%s3 + $0x20] sm:$0xf]
    %v190 = vld [vmem:[%s3 + $0x24] sm:$0xf]
    %v191 = vld [vmem:[%s3 + $0x28] sm:$0xf]
    %v192 = vld [vmem:[%s3 + $0x2c] sm:$0xf]
    %v193 = vld [vmem:[%s3 + $0x30] sm:$0xf]
    %v194 = vld [vmem:[%s3 + $0x34] sm:$0xf]
    %v195 = vld [vmem:[%s3 + $0x38] sm:$0xf]
    %v196 = vld [vmem:[%s3 + $0x3c] sm:$0xf]
    %v197 = vld [vmem:[%s4] sm:$0x1]
    %v199 = vlaneseq
    %v200 = vshrl.u32 %v199, 7
    %v201 = vsub.s32 0, %v200
    %v202 = vrot.slane %v197, %v201
    %v220 = vunpack.c.l.b16 %v181
    %v221 = vunpack.c.l.b16 %v182
    %v222 = vunpack.c.l.b16 %v183
    %v223 = vunpack.c.l.b16 %v184
    %v224 = vunpack.c.l.b16 %v185
    %v225 = vunpack.c.l.b16 %v186
    %v226 = vunpack.c.l.b16 %v187
    %v227 = vunpack.c.l.b16 %v188
    %v228 = vunpack.c.l.b16 %v189
    %v229 = vunpack.c.l.b16 %v190
    %v230 = vunpack.c.l.b16 %v191
    %v231 = vunpack.c.l.b16 %v192
    %v232 = vunpack.c.l.b16 %v193
    %v233 = vunpack.c.l.b16 %v194
    %v234 = vunpack.c.l.b16 %v195
    %v235 = vunpack.c.l.b16 %v196
    %v236 = vpack.c.b16 %v221, %v220
    %v237 = vpack.c.b16 %v223, %v222
    %v238 = vpack.c.b16 %v225, %v224
    %v239 = vpack.c.b16 %v227, %v226
    %v240 = vpack.c.b16 %v229, %v228
    %v241 = vpack.c.b16 %v231, %v230
    %v242 = vpack.c.b16 %v233, %v232
    %v243 = vpack.c.b16 %v235, %v234
    %252 = vmatprep.subr.bf16.mxu0 0
    %253 = vmatpush1.bf16.msra.mxu0 %v243
    %254 = vmatprep.subr.bf16.mxu0 0
    %255 = vmatpush1.bf16.msra.mxu0 %v242
    %256 = vmatprep.subr.bf16.mxu0 0
    %257 = vmatpush1.bf16.msra.mxu0 %v241
    %258 = vmatprep.subr.bf16.mxu0 0
    %259 = vmatpush1.bf16.msra.mxu0 %v240
    %260 = vmatprep.subr.bf16.mxu0 0
    %261 = vmatpush1.bf16.msra.mxu0 %v239
    %262 = vmatprep.subr.bf16.mxu0 0
    %263 = vmatpush1.bf16.msra.mxu0 %v238
    %264 = vmatprep.subr.bf16.mxu0 0
    %265 = vmatpush1.bf16.msra.mxu0 %v237
    %266 = vmatprep.subr.bf16.mxu0 0
    %267 = vmatpush1.bf16.msra.mxu0 %v236
    %268 = vmatprep.subr.bf16.mxu0 0
    %269 = vmatpush2.bf16.msra.mxu0 0
    %270 = vmatprep.subr.bf16.mxu0 0
    %271 = vmatpush2.bf16.msra.mxu0 0
    %272 = vmatprep.subr.bf16.mxu0 0
    %273 = vmatpush2.bf16.msra.mxu0 0
    %274 = vmatprep.subr.bf16.mxu0 0
    %275 = vmatpush2.bf16.msra.mxu0 0
    %276 = vmatprep.subr.bf16.mxu0 0
    %277 = vmatpush2.bf16.msra.mxu0 0
    %278 = vmatprep.subr.bf16.mxu0 0
    %279 = vmatpush2.bf16.msra.mxu0 0
    %280 = vmatprep.subr.bf16.mxu0 0
    %281 = vmatpush2.bf16.msra.mxu0 0
    %282 = vmatprep.subr.bf16.mxu0 0
    %283 = vmatpush2.bf16.msra.mxu0 0
    %284 = vmatprep.mubr.bf16.mxu0 0
    %285 = vmatmul.mubr.bf16.gmra.mxu0 %v180
    %v286 = vpop.f32.mrf.mxu0
    %v287 = vadd.f32 %v202, %v286
    %v288 = vpop.f32.mrf.mxu0
    %v289 = vpop.f32.mrf.mxu0
    %v290 = vpop.f32.mrf.mxu0
    %291 = vdwg.mxu0
    %v292 = vpack.c.bf16 %v287, %v287
    %v293 = vmax.bf16 %v292, 0
    %v294 = vld [vmem:[#allocation5] sm:$0xf]
    %v295 = vld [vmem:[#allocation5 + $0x4] sm:$0xf]
    %v296 = vld [vmem:[#allocation5 + $0x8] sm:$0xf]
    %v297 = vld [vmem:[#allocation5 + $0xc] sm:$0xf]
    %v298 = vld [vmem:[#allocation5 + $0x10] sm:$0xf]
    %v299 = vld [vmem:[#allocation5 + $0x14] sm:$0xf]
    %v300 = vld [vmem:[#allocation5 + $0x18] sm:$0xf]
    %v301 = vld [vmem:[#allocation5 + $0x1c] sm:$0xf]
    %v302 = vld [vmem:[#allocation5 + $0x20] sm:$0xf]
    %v303 = vld [vmem:[#allocation5 + $0x24] sm:$0xf]
    %v304 = vld [vmem:[#allocation5 + $0x28] sm:$0xf]
    %v305 = vld [vmem:[#allocation5 + $0x2c] sm:$0xf]
    %v306 = vld [vmem:[#allocation5 + $0x30] sm:$0xf]
    %v307 = vld [vmem:[#allocation5 + $0x34] sm:$0xf]
    %v308 = vld [vmem:[#allocation5 + $0x38] sm:$0xf]
    %v309 = vld [vmem:[#allocation5 + $0x3c] sm:$0xf]
    %v310 = vld [vmem:[%s6] sm:$0x1]
    %v312 = vlaneseq
    %v313 = vshrl.u32 %v312, 7
    %v314 = vsub.s32 0, %v313
    %v315 = vrot.slane %v310, %v314
    %v333 = vunpack.c.l.b16 %v294
    %v334 = vunpack.c.l.b16 %v295
    %v335 = vunpack.c.l.b16 %v296
    %v336 = vunpack.c.l.b16 %v297
    %v337 = vunpack.c.l.b16 %v298
    %v338 = vunpack.c.l.b16 %v299
    %v339 = vunpack.c.l.b16 %v300
    %v340 = vunpack.c.l.b16 %v301
    %v341 = vunpack.c.l.b16 %v302
    %v342 = vunpack.c.l.b16 %v303
    %v343 = vunpack.c.l.b16 %v304
    %v344 = vunpack.c.l.b16 %v305
    %v345 = vunpack.c.l.b16 %v306
    %v346 = vunpack.c.l.b16 %v307
    %v347 = vunpack.c.l.b16 %v308
    %v348 = vunpack.c.l.b16 %v309
    %v349 = vpack.c.b16 %v334, %v333
    %v350 = vpack.c.b16 %v336, %v335
    %v351 = vpack.c.b16 %v338, %v337
    %v352 = vpack.c.b16 %v340, %v339
    %v353 = vpack.c.b16 %v342, %v341
    %v354 = vpack.c.b16 %v344, %v343
    %v355 = vpack.c.b16 %v346, %v345
    %v356 = vpack.c.b16 %v348, %v347
    %365 = vmatprep.subr.bf16.mxu0 0
    %366 = vmatpush1.bf16.msra.mxu0 %v356
    %367 = vmatprep.subr.bf16.mxu0 0
    %368 = vmatpush1.bf16.msra.mxu0 %v355
    %369 = vmatprep.subr.bf16.mxu0 0
    %370 = vmatpush1.bf16.msra.mxu0 %v354
    %371 = vmatprep.subr.bf16.mxu0 0
    %372 = vmatpush1.bf16.msra.mxu0 %v353
    %373 = vmatprep.subr.bf16.mxu0 0
    %374 = vmatpush1.bf16.msra.mxu0 %v352
    %375 = vmatprep.subr.bf16.mxu0 0
    %376 = vmatpush1.bf16.msra.mxu0 %v351
    %377 = vmatprep.subr.bf16.mxu0 0
    %378 = vmatpush1.bf16.msra.mxu0 %v350
    %379 = vmatprep.subr.bf16.mxu0 0
    %380 = vmatpush1.bf16.msra.mxu0 %v349
    %381 = vmatprep.subr.bf16.mxu0 0
    %382 = vmatpush2.bf16.msra.mxu0 0
    %383 = vmatprep.subr.bf16.mxu0 0
    %384 = vmatpush2.bf16.msra.mxu0 0
    %385 = vmatprep.subr.bf16.mxu0 0
    %386 = vmatpush2.bf16.msra.mxu0 0
    %387 = vmatprep.subr.bf16.mxu0 0
    %388 = vmatpush2.bf16.msra.mxu0 0
    %389 = vmatprep.subr.bf16.mxu0 0
    %390 = vmatpush2.bf16.msra.mxu0 0
    %391 = vmatprep.subr.bf16.mxu0 0
    %392 = vmatpush2.bf16.msra.mxu0 0
    %393 = vmatprep.subr.bf16.mxu0 0
    %394 = vmatpush2.bf16.msra.mxu0 0
    %395 = vmatprep.subr.bf16.mxu0 0
    %396 = vmatpush2.bf16.msra.mxu0 0
    %397 = vmatprep.mubr.bf16.mxu0 0
    %398 = vmatmul.mubr.bf16.gmra.mxu0 %v293
    %v399 = vpop.f32.mrf.mxu0
    %v400 = vadd.f32 %v315, %v399
    %v401 = vpop.f32.mrf.mxu0
    %v402 = vpop.f32.mrf.mxu0
    %v403 = vpop.f32.mrf.mxu0
    %404 = vdwg.mxu0
    %v405 = vpack.c.bf16 %v400, %v400
    %v406 = vmax.bf16 %v405, 0
    %v407 = vld [vmem:[#allocation7] sm:$0xf]
    %v408 = vld [vmem:[#allocation7 + $0x4] sm:$0xf]
    %v409 = vld [vmem:[#allocation7 + $0x8] sm:$0xf]
    %v410 = vld [vmem:[#allocation7 + $0xc] sm:$0xf]
    %v411 = vld [vmem:[#allocation7 + $0x10] sm:$0xf]
    %v412 = vld [vmem:[#allocation7 + $0x14] sm:$0xf]
    %v413 = vld [vmem:[#allocation7 + $0x18] sm:$0xf]
    %v414 = vld [vmem:[#allocation7 + $0x1c] sm:$0xf]
    %v415 = vld [vmem:[#allocation7 + $0x20] sm:$0xf]
    %v416 = vld [vmem:[#allocation7 + $0x24] sm:$0xf]
    %v417 = vld [vmem:[#allocation7 + $0x28] sm:$0xf]
    %v418 = vld [vmem:[#allocation7 + $0x2c] sm:$0xf]
    %v419 = vld [vmem:[#allocation7 + $0x30] sm:$0xf]
    %v420 = vld [vmem:[#allocation7 + $0x34] sm:$0xf]
    %v421 = vld [vmem:[#allocation7 + $0x38] sm:$0xf]
    %v422 = vld [vmem:[#allocation7 + $0x3c] sm:$0xf]
    %v423 = vld [vmem:[%s8] sm:$0x1]
    %v425 = vlaneseq
    %v426 = vshrl.u32 %v425, 7
    %v427 = vsub.s32 0, %v426
    %v428 = vrot.slane %v423, %v427
    %v446 = vunpack.c.l.b16 %v407
    %v447 = vunpack.c.l.b16 %v408
    %v448 = vunpack.c.l.b16 %v409
    %v449 = vunpack.c.l.b16 %v410
    %v450 = vunpack.c.l.b16 %v411
    %v451 = vunpack.c.l.b16 %v412
    %v452 = vunpack.c.l.b16 %v413
    %v453 = vunpack.c.l.b16 %v414
    %v454 = vunpack.c.l.b16 %v415
    %v455 = vunpack.c.l.b16 %v416
    %v456 = vunpack.c.l.b16 %v417
    %v457 = vunpack.c.l.b16 %v418
    %v458 = vunpack.c.l.b16 %v419
    %v459 = vunpack.c.l.b16 %v420
    %v460 = vunpack.c.l.b16 %v421
    %v461 = vunpack.c.l.b16 %v422
    %v462 = vpack.c.b16 %v447, %v446
    %v463 = vpack.c.b16 %v449, %v448
    %v464 = vpack.c.b16 %v451, %v450
    %v465 = vpack.c.b16 %v453, %v452
    %v466 = vpack.c.b16 %v455, %v454
    %v467 = vpack.c.b16 %v457, %v456
    %v468 = vpack.c.b16 %v459, %v458
    %v469 = vpack.c.b16 %v461, %v460
    %478 = vmatprep.subr.bf16.mxu0 0
    %479 = vmatpush1.bf16.msra.mxu0 %v469
    %480 = vmatprep.subr.bf16.mxu0 0
    %481 = vmatpush1.bf16.msra.mxu0 %v468
    %482 = vmatprep.subr.bf16.mxu0 0
    %483 = vmatpush1.bf16.msra.mxu0 %v467
    %484 = vmatprep.subr.bf16.mxu0 0
    %485 = vmatpush1.bf16.msra.mxu0 %v466
    %486 = vmatprep.subr.bf16.mxu0 0
    %487 = vmatpush1.bf16.msra.mxu0 %v465
    %488 = vmatprep.subr.bf16.mxu0 0
    %489 = vmatpush1.bf16.msra.mxu0 %v464
    %490 = vmatprep.subr.bf16.mxu0 0
    %491 = vmatpush1.bf16.msra.mxu0 %v463
    %492 = vmatprep.subr.bf16.mxu0 0
    %493 = vmatpush1.bf16.msra.mxu0 %v462
    %494 = vmatprep.subr.bf16.mxu0 0
    %495 = vmatpush2.bf16.msra.mxu0 0
    %496 = vmatprep.subr.bf16.mxu0 0
    %497 = vmatpush2.bf16.msra.mxu0 0
    %498 = vmatprep.subr.bf16.mxu0 0
    %499 = vmatpush2.bf16.msra.mxu0 0
    %500 = vmatprep.subr.bf16.mxu0 0
    %501 = vmatpush2.bf16.msra.mxu0 0
    %502 = vmatprep.subr.bf16.mxu0 0
    %503 = vmatpush2.bf16.msra.mxu0 0
    %504 = vmatprep.subr.bf16.mxu0 0
    %505 = vmatpush2.bf16.msra.mxu0 0
    %506 = vmatprep.subr.bf16.mxu0 0
    %507 = vmatpush2.bf16.msra.mxu0 0
    %508 = vmatprep.subr.bf16.mxu0 0
    %509 = vmatpush2.bf16.msra.mxu0 0
    %510 = vmatprep.mubr.bf16.mxu0 0
    %511 = vmatmul.mubr.bf16.gmra.mxu0 %v406
    %v512 = vpop.f32.mrf.mxu0
    %v513 = vadd.f32 %v428, %v512
    %v514 = vpop.f32.mrf.mxu0
    %v515 = vpop.f32.mrf.mxu0
    %v516 = vpop.f32.mrf.mxu0
    %517 = vdwg.mxu0
    %v518 = vpack.c.bf16 %v513, %v513
    %v519 = vmax.bf16 %v518, 0
    %v520 = vld [vmem:[#allocation8] sm:$0xf]
    %v521 = vld [vmem:[#allocation8 + $0x4] sm:$0xf]
    %v522 = vld [vmem:[#allocation8 + $0x8] sm:$0xf]
    %v523 = vld [vmem:[#allocation8 + $0xc] sm:$0xf]
    %v524 = vld [vmem:[#allocation8 + $0x10] sm:$0xf]
    %v525 = vld [vmem:[#allocation8 + $0x14] sm:$0xf]
    %v526 = vld [vmem:[#allocation8 + $0x18] sm:$0xf]
    %v527 = vld [vmem:[#allocation8 + $0x1c] sm:$0xf]
    %v528 = vld [vmem:[#allocation8 + $0x20] sm:$0xf]
    %v529 = vld [vmem:[#allocation8 + $0x24] sm:$0xf]
    %v530 = vld [vmem:[#allocation8 + $0x28] sm:$0xf]
    %v531 = vld [vmem:[#allocation8 + $0x2c] sm:$0xf]
    %v532 = vld [vmem:[#allocation8 + $0x30] sm:$0xf]
    %v533 = vld [vmem:[#allocation8 + $0x34] sm:$0xf]
    %v534 = vld [vmem:[#allocation8 + $0x38] sm:$0xf]
    %v535 = vld [vmem:[#allocation8 + $0x3c] sm:$0xf]
    %v536 = vld [vmem:[#allocation10] sm:$0x1]
    %v538 = vlaneseq
    %v539 = vshrl.u32 %v538, 7
    %v540 = vsub.s32 0, %v539
    %v541 = vrot.slane %v536, %v540
    %v559 = vunpack.c.l.b16 %v520
    %v560 = vunpack.c.l.b16 %v521
    %v561 = vunpack.c.l.b16 %v522
    %v562 = vunpack.c.l.b16 %v523
    %v563 = vunpack.c.l.b16 %v524
    %v564 = vunpack.c.l.b16 %v525
    %v565 = vunpack.c.l.b16 %v526
    %v566 = vunpack.c.l.b16 %v527
    %v567 = vunpack.c.l.b16 %v528
    %v568 = vunpack.c.l.b16 %v529
    %v569 = vunpack.c.l.b16 %v530
    %v570 = vunpack.c.l.b16 %v531
    %v571 = vunpack.c.l.b16 %v532
    %v572 = vunpack.c.l.b16 %v533
    %v573 = vunpack.c.l.b16 %v534
    %v574 = vunpack.c.l.b16 %v535
    %v575 = vpack.c.b16 %v560, %v559
    %v576 = vpack.c.b16 %v562, %v561
    %v577 = vpack.c.b16 %v564, %v563
    %v578 = vpack.c.b16 %v566, %v565
    %v579 = vpack.c.b16 %v568, %v567
    %v580 = vpack.c.b16 %v570, %v569
    %v581 = vpack.c.b16 %v572, %v571
    %v582 = vpack.c.b16 %v574, %v573
    %591 = vmatprep.subr.bf16.mxu0 0
    %592 = vmatpush1.bf16.msra.mxu0 %v582
    %593 = vmatprep.subr.bf16.mxu0 0
    %594 = vmatpush1.bf16.msra.mxu0 %v581
    %595 = vmatprep.subr.bf16.mxu0 0
    %596 = vmatpush1.bf16.msra.mxu0 %v580
    %597 = vmatprep.subr.bf16.mxu0 0
    %598 = vmatpush1.bf16.msra.mxu0 %v579
    %599 = vmatprep.subr.bf16.mxu0 0
    %600 = vmatpush1.bf16.msra.mxu0 %v578
    %601 = vmatprep.subr.bf16.mxu0 0
    %602 = vmatpush1.bf16.msra.mxu0 %v577
    %603 = vmatprep.subr.bf16.mxu0 0
    %604 = vmatpush1.bf16.msra.mxu0 %v576
    %605 = vmatprep.subr.bf16.mxu0 0
    %606 = vmatpush1.bf16.msra.mxu0 %v575
    %607 = vmatprep.subr.bf16.mxu0 0
    %608 = vmatpush2.bf16.msra.mxu0 0
    %609 = vmatprep.subr.bf16.mxu0 0
    %610 = vmatpush2.bf16.msra.mxu0 0
    %611 = vmatprep.subr.bf16.mxu0 0
    %612 = vmatpush2.bf16.msra.mxu0 0
    %613 = vmatprep.subr.bf16.mxu0 0
    %614 = vmatpush2.bf16.msra.mxu0 0
    %615 = vmatprep.subr.bf16.mxu0 0
    %616 = vmatpush2.bf16.msra.mxu0 0
    %617 = vmatprep.subr.bf16.mxu0 0
    %618 = vmatpush2.bf16.msra.mxu0 0
    %619 = vmatprep.subr.bf16.mxu0 0
    %620 = vmatpush2.bf16.msra.mxu0 0
    %621 = vmatprep.subr.bf16.mxu0 0
    %622 = vmatpush2.bf16.msra.mxu0 0
    %623 = vmatprep.mubr.bf16.mxu0 0
    %624 = vmatmul.mubr.bf16.gmra.mxu0 %v519
    %v625 = vpop.f32.mrf.mxu0
    %v626 = vadd.f32 %v541, %v625
    %v627 = vpop.f32.mrf.mxu0
    %v628 = vpop.f32.mrf.mxu0
    %v629 = vpop.f32.mrf.mxu0
    %630 = vdwg.mxu0
    %v631 = vpack.c.bf16 %v626, %v626
    %v632 = vmax.bf16 %v631, 0
    %v633 = vld [vmem:[%s11] sm:$0xf]
    %v634 = vld [vmem:[%s11 + $0x4] sm:$0xf]
    %v635 = vld [vmem:[%s11 + $0x8] sm:$0xf]
    %v636 = vld [vmem:[%s11 + $0xc] sm:$0xf]
    %v637 = vld [vmem:[%s11 + $0x10] sm:$0xf]
    %v638 = vld [vmem:[%s11 + $0x14] sm:$0xf]
    %v639 = vld [vmem:[%s11 + $0x18] sm:$0xf]
    %v640 = vld [vmem:[%s11 + $0x1c] sm:$0xf]
    %v641 = vld [vmem:[%s11 + $0x20] sm:$0xf]
    %v642 = vld [vmem:[%s11 + $0x24] sm:$0xf]
    %v643 = vld [vmem:[%s11 + $0x28] sm:$0xf]
    %v644 = vld [vmem:[%s11 + $0x2c] sm:$0xf]
    %v645 = vld [vmem:[%s11 + $0x30] sm:$0xf]
    %v646 = vld [vmem:[%s11 + $0x34] sm:$0xf]
    %v647 = vld [vmem:[%s11 + $0x38] sm:$0xf]
    %v648 = vld [vmem:[%s11 + $0x3c] sm:$0xf]
    %v649 = vld [vmem:[%s12] sm:$0x1]
    %v651 = vlaneseq
    %v652 = vshrl.u32 %v651, 7
    %v653 = vsub.s32 0, %v652
    %v654 = vrot.slane %v649, %v653
    %v672 = vunpack.c.l.b16 %v633
    %v673 = vunpack.c.l.b16 %v634
    %v674 = vunpack.c.l.b16 %v635
    %v675 = vunpack.c.l.b16 %v636
    %v676 = vunpack.c.l.b16 %v637
    %v677 = vunpack.c.l.b16 %v638
    %v678 = vunpack.c.l.b16 %v639
    %v679 = vunpack.c.l.b16 %v640
    %v680 = vunpack.c.l.b16 %v641
    %v681 = vunpack.c.l.b16 %v642
    %v682 = vunpack.c.l.b16 %v643
    %v683 = vunpack.c.l.b16 %v644
    %v684 = vunpack.c.l.b16 %v645
    %v685 = vunpack.c.l.b16 %v646
    %v686 = vunpack.c.l.b16 %v647
    %v687 = vunpack.c.l.b16 %v648
    %v688 = vpack.c.b16 %v673, %v672
    %v689 = vpack.c.b16 %v675, %v674
    %v690 = vpack.c.b16 %v677, %v676
    %v691 = vpack.c.b16 %v679, %v678
    %v692 = vpack.c.b16 %v681, %v680
    %v693 = vpack.c.b16 %v683, %v682
    %v694 = vpack.c.b16 %v685, %v684
    %v695 = vpack.c.b16 %v687, %v686
    %704 = vmatprep.subr.bf16.mxu0 0
    %705 = vmatpush1.bf16.msra.mxu0 %v695
    %706 = vmatprep.subr.bf16.mxu0 0
    %707 = vmatpush1.bf16.msra.mxu0 %v694
    %708 = vmatprep.subr.bf16.mxu0 0
    %709 = vmatpush1.bf16.msra.mxu0 %v693
    %710 = vmatprep.subr.bf16.mxu0 0
    %711 = vmatpush1.bf16.msra.mxu0 %v692
    %712 = vmatprep.subr.bf16.mxu0 0
    %713 = vmatpush1.bf16.msra.mxu0 %v691
    %714 = vmatprep.subr.bf16.mxu0 0
    %715 = vmatpush1.bf16.msra.mxu0 %v690
    %716 = vmatprep.subr.bf16.mxu0 0
    %717 = vmatpush1.bf16.msra.mxu0 %v689
    %718 = vmatprep.subr.bf16.mxu0 0
    %719 = vmatpush1.bf16.msra.mxu0 %v688
    %720 = vmatprep.subr.bf16.mxu0 0
    %721 = vmatpush2.bf16.msra.mxu0 0
    %722 = vmatprep.subr.bf16.mxu0 0
    %723 = vmatpush2.bf16.msra.mxu0 0
    %724 = vmatprep.subr.bf16.mxu0 0
    %725 = vmatpush2.bf16.msra.mxu0 0
    %726 = vmatprep.subr.bf16.mxu0 0
    %727 = vmatpush2.bf16.msra.mxu0 0
    %728 = vmatprep.subr.bf16.mxu0 0
    %729 = vmatpush2.bf16.msra.mxu0 0
    %730 = vmatprep.subr.bf16.mxu0 0
    %731 = vmatpush2.bf16.msra.mxu0 0
    %732 = vmatprep.subr.bf16.mxu0 0
    %733 = vmatpush2.bf16.msra.mxu0 0
    %734 = vmatprep.subr.bf16.mxu0 0
    %735 = vmatpush2.bf16.msra.mxu0 0
    %736 = vmatprep.mubr.bf16.mxu0 0
    %737 = vmatmul.mubr.bf16.gmra.mxu0 %v632
    %v738 = vpop.f32.mrf.mxu0
    %v739 = vadd.f32 %v654, %v738
    %v740 = vpop.f32.mrf.mxu0
    %v741 = vpop.f32.mrf.mxu0
    %v742 = vpop.f32.mrf.mxu0
    %743 = vdwg.mxu0
    %v744 = vxor.u32 %v739, 2147483648
    %v745 = vmul.f32 %v744, 1.442695
    %v746 = vpow.pop %v745
    %v747 = vadd.f32 %v746, 1.0
    %v748 = vrcp.pop %v747
    %v749 = vmul.f32 1.0, %v748
    %750 = vst.msk [vmem:[#allocation11] sm:$0xff] %vm135, %v749
    // Predicated region
    $region74: #{tpu_custom_call.1} parent=1 // pred_check
      _
    $region75: #{tpu_custom_call.1} parent=1 // pred_check_branch
      %752 = sbr.rel (0) target = $region77
    $region76: #{tpu_custom_call.1} parent=1 // pred_region
      %s754 = ssub.s32 128, 128
      %755 = vsyncadd [#allocation4], %s754
      %s757 = sshll.u32 [#allocation11], 4
      %s758 = int_to_ptr.vmem [resolvable:$true] %s757
      %760 = dma.vmem_to_hbm [thread:$0]  %s758, 128, %s13, [#allocation4]
    $region77: #{tpu_custom_call.1} parent=1 // pred_fallthru
      _
    // Predicated region
    $region78: #{tpu_custom_call.1} parent=1 // pred_check
      _
    $region79: #{tpu_custom_call.1} parent=1 // pred_check_branch
      %762 = sbr.rel (0) target = $region81
    $region80: #{tpu_custom_call.1} parent=1 // pred_region
      %763 = dma.done [#allocation4], 128
    $region81: #{tpu_custom_call.1} parent=1 // pred_fallthru
      _
    %764 = vsyncpa [#allocation3], 1
    %765 = vsyncpa [#allocation6], 1
    %766 = vsyncpa [#allocation9], 1
    %767 = vsyncpa [#allocation4], 1

</llo_original>
